<compile_context>
chip_gen: v6e
topology: v6e:2x2x1
jax: 0.10.0
libtpu: 0.0.40
codegen_flags: <defaults>
</compile_context>

<pallas_src>
import math
import functools

import jax
import jax.numpy as jnp
from jax.experimental import pallas as pl
from jax.experimental.pallas import tpu as pltpu


def _cdiv(a, b):
    return (a + b - 1) // b


def _round_up(x, m):
    return ((x + m - 1) // m) * m


def _vmem_ceiling_bytes():
    """Generation-aware scoped-VMEM ceiling (v7x has only 64 MiB physical per TC)."""
    try:
        kind = jax.devices()[0].device_kind.lower()
    except Exception:
        kind = ""
    if "v7" in kind:
        return 48 * 1024 * 1024
    return 96 * 1024 * 1024            # v5e / v6e: 128 MiB physical


def _resident_spec(shape):
    """Constant-index-map (resident) operand; single-buffered when supported."""
    try:
        return pl.BlockSpec(shape, lambda i: (0, 0), pipeline_mode=pl.Buffered(1))
    except TypeError:                  # older jax without pipeline_mode kwarg
        return pl.BlockSpec(shape, lambda i: (0, 0))


def critic_kernel(x_ref, w1_ref, b1_ref, w2_ref, b2_ref, v_ref):
    # fc1 on the MXU: (TB, D) @ (D, H) -> (TB, H), f32 accumulation.
    h = jnp.dot(x_ref[...], w1_ref[...], preferred_element_type=jnp.float32)
    # bias + ReLU on the VPU, kept in f32 (safe on v5e: no bf16 VPU there).
    h = jnp.maximum(h + b1_ref[...], 0.0)
    # fc2 as a VPU multiply + lane reduce against the (1, H) weight row:
    #   v[t] = sum_j h[t, j] * w2[j]
    # (If a bundle dump ever shows the XLU slot binding on v6e/v7x, move this onto
    #  the mostly-idle MXU as jnp.dot(h, w2_col); neutral while HBM/step bound.)
    v = jnp.sum(h * w2_ref[...], axis=-1, keepdims=True)        # (TB, 1)
    v = v + b2_ref[0, 0]                                        # scalar bias from SMEM
    # Lane-dense store: one (1, TB) row per grid step.
    v_ref[...] = v.T.astype(v_ref.dtype)


def prepare_critic_params(w1, b1, w2, b2):
    """One-time (init-time) parameter prep, hoisted out of the per-call jit path.

    Pads n_hidden to a lane-dense multiple of 128 (zeros are exact through ReLU
    and the fc2 dot) and flattens the fc2 weights into a single (1, Hp) row.
    w1: (D, H)  b1: (1, H)  w2: (H, 1)  b2: (1, 1)   ->   (w1p, b1p, w2_row, b2)
    """
    D, H = w1.shape
    Hp = _round_up(H, 128)
    if Hp != H:
        w1 = jnp.pad(w1, ((0, 0), (0, Hp - H)))
        b1 = jnp.pad(b1, ((0, 0), (0, Hp - H)))
        w2 = jnp.pad(w2, ((0, Hp - H), (0, 0)))
    return w1, b1, w2.reshape(1, Hp), b2


@functools.partial(jax.jit, static_argnames=("block_b",))
def critic_forward(x, w1, b1, w2_row, b2, *, block_b=4096):
    """v = relu(x @ w1 + b1) @ w2 + b2, returned with shape (B, 1).

    Takes the pre-padded params from prepare_critic_params:
      x: (B, D)   w1: (D, Hp)   b1: (1, Hp)   w2_row: (1, Hp)   b2: (1, 1)
    (weights stored transposed vs PyTorch so the kernel computes x @ W, matching
     nn.Linear's y = x @ W.T + b.)
    """
    B, D = x.shape
    Hp = w1.shape[1]

    # ---- VMEM budget from the real buffer counts ------------------------------
    # per batch-row (f32): x tile x2 buffers, output row x2 buffers, h + fc2 temp.
    bytes_per_row = 4 * (2 * D + 2 + 2 * Hp)
    weight_bytes = 4 * (D * Hp + 2 * Hp)            # single-buffered residents
    headroom = 2 * 1024 * 1024
    ceiling = _vmem_ceiling_bytes()
    tb_vmem_max = max(8, ((ceiling - weight_bytes - headroom) // bytes_per_row) // 8 * 8)
    tb_cap = max(8, min(block_b, tb_vmem_max))

    # ---- batch tile: whole batch if it fits, else an even number of steps -----
    if B <= tb_cap:
        tb = _round_up(B, 8)
    else:
        nt = _cdiv(B, tb_cap)
        if nt % 2:
            nt += 1                                  # balanced across v7x's 2 TCs
        tb = _round_up(_cdiv(B, nt), 8)
    num_tiles = _cdiv(B, tb)                         # no wrapper-side batch padding

    vmem_needed = tb * bytes_per_row + weight_bytes + headroom
    vmem_limit = int(min(max(vmem_needed, 16 * 1024 * 1024), ceiling))

    # TODO(synk): if numerics allow, stream x / w1 in bf16 (keep f32 accumulation
    # and all post-matmul math in f32) to halve the dominant HBM stream.
    # Note: D is deliberately NOT padded to 128 -- this kernel is memory bound and
    # padding D would inflate the dominant x HBM stream (MXU fill does not matter).

    out = pl.pallas_call(
        critic_kernel,
        out_shape=jax.ShapeDtypeStruct((num_tiles, tb), jnp.float32),
        grid=(num_tiles,),
        in_specs=[
            pl.BlockSpec((tb, D), lambda i: (i, 0)),               # x tile (pipelined)
            _resident_spec((D, Hp)),                               # W1 resident
            _resident_spec((1, Hp)),                               # b1 resident
            _resident_spec((1, Hp)),                               # W2 row resident
            pl.BlockSpec(memory_space=pltpu.MemorySpace.SMEM),     # b2 scalar
        ],
        out_specs=pl.BlockSpec((1, tb), lambda i: (i, 0)),         # lane-dense row
        compiler_params=pltpu.CompilerParams(
            dimension_semantics=("parallel",),   # 2-TC sharding on v7x, harmless elsewhere
            vmem_limit_bytes=vmem_limit,
        ),
    )(x, w1, b1, w2_row, b2)

    # back to the PyTorch layout (B, 1); rows >= B (partial last tile) are dropped.
    return out.reshape(-1)[:B].reshape(B, 1)


def init_params(key, dim_state, n_hidden):
    """Deterministic init mimicking PyTorch nn.Linear default (uniform +/- 1/sqrt(fan_in))."""
    k1, k2, k3, k4 = jax.random.split(key, 4)
    bound1 = 1.0 / math.sqrt(dim_state)
    bound2 = 1.0 / math.sqrt(n_hidden)
    # stored as (in, out) so the kernel does x @ W
    w1 = jax.random.uniform(k1, (dim_state, n_hidden), jnp.float32, -bound1, bound1)
    b1 = jax.random.uniform(k2, (1, n_hidden), jnp.float32, -bound1, bound1)
    w2 = jax.random.uniform(k3, (n_hidden, 1), jnp.float32, -bound2, bound2)
    b2 = jax.random.uniform(k4, (1, 1), jnp.float32, -bound2, bound2)
    return w1, b1, w2, b2


if __name__ == "__main__":
    key = jax.random.PRNGKey(0)
    B, dim_state, n_hidden = 8, 16, 32

    kx, kp, kx2 = jax.random.split(key, 3)
    x = jax.random.normal(kx, (B, dim_state), jnp.float32)
    w1, b1, w2, b2 = init_params(kp, dim_state, n_hidden)

    # one-time parameter prep (hidden-dim padding hoisted out of the forward path)
    w1p, b1p, w2_row, b2p = prepare_critic_params(w1, b1, w2, b2)

    ref_fn = lambda xx: jnp.maximum(xx @ w1 + b1, 0.0) @ w2 + b2

    # small-shape run (single grid step, whole batch in one tile)
    v = jax.block_until_ready(critic_forward(x, w1p, b1p, w2_row, b2p))
    ref = ref_fn(x)
    assert v.shape == (B, 1)
    assert jnp.allclose(v, ref, atol=1e-4, rtol=1e-4), float(jnp.max(jnp.abs(v - ref)))

    # larger batch, default (big-tile) path: single tile, no batch padding copy
    B2 = 1040
    x2 = jax.random.normal(kx2, (B2, dim_state), jnp.float32)
    v2 = jax.block_until_ready(critic_forward(x2, w1p, b1p, w2_row, b2p))
    ref2 = ref_fn(x2)
    assert v2.shape == (B2, 1)
    assert jnp.allclose(v2, ref2, atol=1e-4, rtol=1e-4), float(jnp.max(jnp.abs(v2 - ref2)))

    # force the tiled / pipelined path (even step count + partial final block,
    # exercising the no-wrapper-padding behaviour); block_b deliberately small here.
    v2t = jax.block_until_ready(critic_forward(x2, w1p, b1p, w2_row, b2p, block_b=512))
    assert v2t.shape == (B2, 1)
    assert jnp.allclose(v2t, ref2, atol=1e-4, rtol=1e-4), float(jnp.max(jnp.abs(v2t - ref2)))

    print("KERNEL_OK")
</pallas_src>

<mosaic_0001>
module attributes {stable_mosaic.version = 11 : i64} {
  func.func @critic_kernel(%arg0: i32, %arg1: memref<8x16xf32, #tpu.memory_space<vmem>>, %arg2: memref<16x128xf32, #tpu.memory_space<vmem>>, %arg3: memref<1x128xf32, #tpu.memory_space<vmem>>, %arg4: memref<1x128xf32, #tpu.memory_space<vmem>>, %arg5: memref<1x1xf32, #tpu.memory_space<smem>>, %arg6: memref<1x8xf32, #tpu.memory_space<vmem>>) attributes {dimension_semantics = [#tpu.dimension_semantics<parallel>], iteration_bounds = array<i64: 1>, scalar_prefetch = 0 : i64, scratch_operands = 0 : i64, tpu.core_type = #tpu.core_type<tc>, window_params = [{transform_indices = @transform_0, window_bounds = array<i64: 8, 16>}, {pipeline_mode = #tpu.pipeline_mode<synchronous>, transform_indices = @transform_1, window_bounds = array<i64: 16, 128>}, {pipeline_mode = #tpu.pipeline_mode<synchronous>, transform_indices = @transform_2, window_bounds = array<i64: 1, 128>}, {pipeline_mode = #tpu.pipeline_mode<synchronous>, transform_indices = @transform_3, window_bounds = array<i64: 1, 128>}, {transform_indices = @transform_4, window_bounds = array<i64: 1, 1>}, {transform_indices = @transform_5, window_bounds = array<i64: 1, 8>}]} {
    %c0 = arith.constant 0 : index
    %c0_0 = arith.constant 0 : index
    %0 = vector.load %arg1[%c0, %c0_0] : memref<8x16xf32, #tpu.memory_space<vmem>>, vector<8x16xf32>
    %c0_1 = arith.constant 0 : index
    %c0_2 = arith.constant 0 : index
    %1 = vector.load %arg2[%c0_1, %c0_2] : memref<16x128xf32, #tpu.memory_space<vmem>>, vector<16x128xf32>
    %cst = arith.constant dense<0.000000e+00> : vector<8x128xf32>
    %2 = tpu.matmul %0, %1, %cst {dimension_numbers = #tpu.dot_dimension_numbers<[1], [0], [0], [1], [0, 0, 1, 1], [], []>} : vector<8x16xf32>, vector<16x128xf32>, vector<8x128xf32> -> vector<8x128xf32>
    %c0_3 = arith.constant 0 : index
    %c0_4 = arith.constant 0 : index
    %3 = vector.load %arg3[%c0_3, %c0_4] : memref<1x128xf32, #tpu.memory_space<vmem>>, vector<1x128xf32>
    %4 = vector.broadcast %3 : vector<1x128xf32> to vector<8x128xf32>
    %5 = arith.addf %2, %4 : vector<8x128xf32>
    %cst_5 = arith.constant 0.000000e+00 : f32
    %6 = vector.broadcast %cst_5 : f32 to vector<8x128xf32>
    %7 = arith.maximumf %5, %6 : vector<8x128xf32>
    %c0_6 = arith.constant 0 : index
    %c0_7 = arith.constant 0 : index
    %8 = vector.load %arg4[%c0_6, %c0_7] : memref<1x128xf32, #tpu.memory_space<vmem>>, vector<1x128xf32>
    %9 = vector.broadcast %8 : vector<1x128xf32> to vector<8x128xf32>
    %10 = arith.mulf %7, %9 : vector<8x128xf32>
    %cst_8 = arith.constant dense<0.000000e+00> : vector<8xf32>
    %11 = vector.multi_reduction <add>, %10, %cst_8 [1] : vector<8x128xf32> to vector<8xf32>
    %12 = vector.shape_cast %11 : vector<8xf32> to vector<8x1xf32>
    %c0_9 = arith.constant 0 : index
    %c0_10 = arith.constant 0 : index
    %13 = memref.load %arg5[%c0_9, %c0_10] : memref<1x1xf32, #tpu.memory_space<smem>>
    %14 = vector.broadcast %13 : f32 to vector<8x1xf32>
    %15 = arith.addf %12, %14 : vector<8x1xf32>
    %16 = tpu.transpose %15, [1, 0] : vector<8x1xf32> -> vector<1x8xf32>
    %c0_11 = arith.constant 0 : index
    %c0_12 = arith.constant 0 : index
    %17 = vector.load %arg6[%c0_11, %c0_12] : memref<1x8xf32, #tpu.memory_space<vmem>>, vector<1x8xf32>
    tpu.vector_store %arg6[%c0_11, %c0_12], %16 {strides = array<i32>} : memref<1x8xf32, #tpu.memory_space<vmem>>, vector<1x8xf32>,
    return
  }
  func.func @transform_0(%arg0: i32) -> (i32, i32) {
    %c0_i32 = arith.constant 0 : i32
    %c0_i32_0 = arith.constant 0 : i32
    return %arg0, %c0_i32 : i32, i32
  }
  func.func @transform_1(%arg0: i32) -> (i32, i32) {
    %c0_i32 = arith.constant 0 : i32
    %c0_i32_0 = arith.constant 0 : i32
    %c0_i32_1 = arith.constant 0 : i32
    return %c0_i32, %c0_i32_0 : i32, i32
  }
  func.func @transform_2(%arg0: i32) -> (i32, i32) {
    %c0_i32 = arith.constant 0 : i32
    %c0_i32_0 = arith.constant 0 : i32
    %c0_i32_1 = arith.constant 0 : i32
    return %c0_i32, %c0_i32_0 : i32, i32
  }
  func.func @transform_3(%arg0: i32) -> (i32, i32) {
    %c0_i32 = arith.constant 0 : i32
    %c0_i32_0 = arith.constant 0 : i32
    %c0_i32_1 = arith.constant 0 : i32
    return %c0_i32, %c0_i32_0 : i32, i32
  }
  func.func @transform_4(%arg0: i32) -> (i32, i32) {
    %c0_i32 = arith.constant 0 : i32
    %c0_i32_0 = arith.constant 0 : i32
    %c0_i32_1 = arith.constant 0 : i32
    return %c0_i32, %c0_i32_0 : i32, i32
  }
  func.func @transform_5(%arg0: i32) -> (i32, i32) {
    %c0_i32 = arith.constant 0 : i32
    %c0_i32_0 = arith.constant 0 : i32
    return %arg0, %c0_i32 : i32, i32
  }
}

</mosaic_0001>

<llo_original>
// kernel: critic_forward.1
$region0: #{critic_forward.1}
  #allocation0 [shape = 'u32[]', space=smem, size = 0x4, offset = 0x4, fixed_abs, tag = 'smem constant byte address 0x4 - core index']
  #allocation1 [shape = 'u32[144,128]{1,0:T(1,128)}', space=vmem, size = 0x12000, scoped, tag = 'internal scratch']
  #allocation2 [shape = 'f32[1,1]{1,0:T(1,128)S(6)}', space=smem, size = 0x200, scoped, tag = 'scoped memory for critic_forward.1']
  %s0 = inlined_call_operand.hbm [shape: f32[8,16], index: 0, kind: input, shape index: {}]
  %s1 = inlined_call_operand.hbm [shape: f32[16,128], index: 1, kind: input, shape index: {}]
  %s2 = inlined_call_operand.vmem [shape: f32[1,128], index: 2, kind: input, shape index: {}]
  %s3 = inlined_call_operand.vmem [shape: f32[1,128], index: 3, kind: input, shape index: {}]
  %s4 = inlined_call_operand.<no memory space> [shape: f32[1,1], index: 4, kind: input, shape index: {}]
  %s5 = inlined_call_operand.hbm [shape: f32[1,8], index: 5, kind: output, shape index: {}]
  %s6 = sld [smem:[#allocation0]]
  $region38: #{critic_forward.1} parent=0
    _
  %s8 = ssub.s32 1, %s6
  %s9 = scalar_select 0, %s8, %s6
  %10 = sst [smem:[#allocation2]] %s4
  $region1: #{critic_forward.1} parent=0
    #allocation3 [shape = 'u8[4096]{0}', space=vmem, size = 0x1000, scoped, tag = 'input window, operand 0, single buffered']
    #allocation4 [shape = 's32[1]{0}', space=sflag, size = 0x4, scoped, tag = 'scoped memory for critic_forward.1']
    #allocation5 [shape = 's32[1]{0}', space=sflag, size = 0x4, scoped, tag = 'scoped memory for critic_forward.1']
    #allocation6 [shape = 'u8[8192]{0}', space=vmem, size = 0x2000, scoped, tag = 'input window, operand 1, single buffered']
    #allocation7 [shape = 's32[1]{0}', space=sflag, size = 0x4, scoped, tag = 'scoped memory for critic_forward.1']
    #allocation8 [shape = 'u8[512]{0}', space=vmem, size = 0x400, scoped, tag = 'output window, operand 0, single buffered']
    %11 = vsyncpa [#allocation4], 0
    %12 = vsyncpa [#allocation7], 0
    %13 = vsyncpa [#allocation5], 0
    // Predicated region
    $region2: #{critic_forward.1} parent=1 // pred_check
      _
    $region3: #{critic_forward.1} parent=1 // pred_check_branch
      %15 = sbr.rel (0) target = $region5
    $region4: #{critic_forward.1} parent=1 // pred_region
      %s17 = ssub.s32 128, 128
      %18 = vsyncadd [#allocation4], %s17
      %s20 = sshll.u32 [#allocation3], 4
      %s21 = int_to_ptr.vmem [resolvable:$true] %s20
      %23 = dma.hbm_to_vmem [thread:$0]  %s0, 128, %s21, [#allocation4]
    $region5: #{critic_forward.1} parent=1 // pred_fallthru
      _
    // Predicated region
    $region6: #{critic_forward.1} parent=1 // pred_check
      _
    $region7: #{critic_forward.1} parent=1 // pred_check_branch
      %25 = sbr.rel (0) target = $region9
    $region8: #{critic_forward.1} parent=1 // pred_region
      %s27 = ssub.s32 256, 256
      %28 = vsyncadd [#allocation7], %s27
      %s29 = sshll.u32 [#allocation6], 4
      %s30 = int_to_ptr.vmem [resolvable:$true] %s29
      %35 = dma.hbm_to_vmem [thread:$0]  %s1, 256, %s30, [#allocation7], 128, 128, 8
    $region9: #{critic_forward.1} parent=1 // pred_fallthru
      _
    // Predicated region
    $region10: #{critic_forward.1} parent=1 // pred_check
      _
    $region11: #{critic_forward.1} parent=1 // pred_check_branch
      %37 = sbr.rel (0) target = $region13
    $region12: #{critic_forward.1} parent=1 // pred_region
      _
    $region13: #{critic_forward.1} parent=1 // pred_fallthru
      _
    // Predicated region
    $region14: #{critic_forward.1} parent=1 // pred_check
      _
    $region15: #{critic_forward.1} parent=1 // pred_check_branch
      %39 = sbr.rel (0) target = $region17
    $region16: #{critic_forward.1} parent=1 // pred_region
      _
    $region17: #{critic_forward.1} parent=1 // pred_fallthru
      _
    // Predicated region
    $region18: #{critic_forward.1} parent=1 // pred_check
      _
    $region19: #{critic_forward.1} parent=1 // pred_check_branch
      %41 = sbr.rel (0) target = $region21
    $region20: #{critic_forward.1} parent=1 // pred_region
      _
    $region21: #{critic_forward.1} parent=1 // pred_fallthru
      _
    // Predicated region
    $region22: #{critic_forward.1} parent=1 // pred_check
      _
    $region23: #{critic_forward.1} parent=1 // pred_check_branch
      %43 = sbr.rel (0) target = $region25
    $region24: #{critic_forward.1} parent=1 // pred_region
      %44 = dma.done [#allocation4], 128
    $region25: #{critic_forward.1} parent=1 // pred_fallthru
      _
    // Predicated region
    $region26: #{critic_forward.1} parent=1 // pred_check
      _
    $region27: #{critic_forward.1} parent=1 // pred_check_branch
      %46 = sbr.rel (0) target = $region29
    $region28: #{critic_forward.1} parent=1 // pred_region
      %47 = dma.done [#allocation7], 256
    $region29: #{critic_forward.1} parent=1 // pred_fallthru
      _
    %v48 = vld [vmem:[#allocation3] sm:$0xff]
    %v49 = vld [vmem:[#allocation6] sm:$0xff]
    %v50 = vld [vmem:[#allocation6 + $0x8] sm:$0xff]
    %v51 = vld [vmem:[%s2] sm:$0x1]
    %v53 = vlaneseq
    %v54 = vshrl.u32 %v53, 7
    %v55 = vsub.s32 0, %v54
    %v56 = vrot.slane %v51, %v55
    %vm58 = vcmask 130048
    %v60 = vsel %vm58, %v48, 0
    %62 = vmatprep.subr.mxu0 0.0
    %63 = vmatpush1.msra.mxu0 0.0
    %64 = vmatprep.subr.mxu0 0.0
    %65 = vmatpush1.msra.mxu0 0.0
    %66 = vmatprep.subr.mxu0 0.0
    %67 = vmatpush1.msra.mxu0 0.0
    %68 = vmatprep.subr.mxu0 0.0
    %69 = vmatpush1.msra.mxu0 0.0
    %70 = vmatprep.subr.mxu0 0.0
    %71 = vmatpush1.msra.mxu0 0.0
    %72 = vmatprep.subr.mxu0 0.0
    %73 = vmatpush1.msra.mxu0 0.0
    %74 = vmatprep.subr.mxu0 0.0
    %75 = vmatpush1.msra.mxu0 0.0
    %76 = vmatprep.subr.mxu0 0.0
    %77 = vmatpush1.msra.mxu0 0.0
    %78 = vmatprep.subr.mxu0 0.0
    %79 = vmatpush1.msra.mxu0 0.0
    %80 = vmatprep.subr.mxu0 0.0
    %81 = vmatpush1.msra.mxu0 0.0
    %82 = vmatprep.subr.mxu0 0.0
    %83 = vmatpush1.msra.mxu0 0.0
    %84 = vmatprep.subr.mxu0 0.0
    %85 = vmatpush1.msra.mxu0 0.0
    %86 = vmatprep.subr.mxu0 0.0
    %87 = vmatpush1.msra.mxu0 0.0
    %88 = vmatprep.subr.mxu0 0.0
    %89 = vmatpush1.msra.mxu0 0.0
    %90 = vmatprep.subr.mxu0 0.0
    %91 = vmatpush1.msra.mxu0 %v50
    %92 = vmatprep.subr.mxu0 0.0
    %93 = vmatpush1.msra.mxu0 %v49
    %94 = vmatprep.subr.mxu0 0.0
    %95 = vmatpush2.msra.mxu0 0.0
    %96 = vmatprep.subr.mxu0 0.0
    %97 = vmatpush2.msra.mxu0 0.0
    %98 = vmatprep.subr.mxu0 0.0
    %99 = vmatpush2.msra.mxu0 0.0
    %100 = vmatprep.subr.mxu0 0.0
    %101 = vmatpush2.msra.mxu0 0.0
    %102 = vmatprep.subr.mxu0 0.0
    %103 = vmatpush2.msra.mxu0 0.0
    %104 = vmatprep.subr.mxu0 0.0
    %105 = vmatpush2.msra.mxu0 0.0
    %106 = vmatprep.subr.mxu0 0.0
    %107 = vmatpush2.msra.mxu0 0.0
    %108 = vmatprep.subr.mxu0 0.0
    %109 = vmatpush2.msra.mxu0 0.0
    %110 = vmatprep.subr.mxu0 0.0
    %111 = vmatpush2.msra.mxu0 0.0
    %112 = vmatprep.subr.mxu0 0.0
    %113 = vmatpush2.msra.mxu0 0.0
    %114 = vmatprep.subr.mxu0 0.0
    %115 = vmatpush2.msra.mxu0 0.0
    %116 = vmatprep.subr.mxu0 0.0
    %117 = vmatpush2.msra.mxu0 0.0
    %118 = vmatprep.subr.mxu0 0.0
    %119 = vmatpush2.msra.mxu0 0.0
    %120 = vmatprep.subr.mxu0 0.0
    %121 = vmatpush2.msra.mxu0 0.0
    %122 = vmatprep.subr.mxu0 0.0
    %123 = vmatpush2.msra.mxu0 0.0
    %124 = vmatprep.subr.mxu0 0.0
    %125 = vmatpush2.msra.mxu0 0.0
    %126 = vmatprep.mubr.f32.mxu0 0.0
    %127 = vmatmul.mubr.f32.gmra.mxu0 %v60
    %v128 = vpop.f32.mrf.mxu0
    %v129 = vadd.f32 %v56, %v128
    %v130 = vpop.f32.mrf.mxu0
    %131 = vdwg.mxu0
    %v132 = vmax.f32 %v129, 0.0
    %v133 = vld [vmem:[%s3] sm:$0x1]
    %v135 = vlaneseq
    %v136 = vshrl.u32 %v135, 7
    %v137 = vsub.s32 0, %v136
    %v138 = vrot.slane %v133, %v137
    %v140 = vmul.f32 %v132, %v138
    %141 = vadd.xlane.f32.xlu0 %v140
    %v142 = vpop.xlane.xlu0 %141
    %s143 = sld [smem:[#allocation2]]
    %v144 = vstv %s143
    %v145 = vadd.f32 %v142, %v144
    %146 = vxpose.xlu0.b32.start [1/16] %v145, 128
    %147 = vxpose.xlu0.b32.cont [2/16] 0.0, 128
    %148 = vxpose.xlu0.b32.cont [3/16] 0.0, 128
    %149 = vxpose.xlu0.b32.cont [4/16] 0.0, 128
    %150 = vxpose.xlu0.b32.cont [5/16] 0.0, 128
    %151 = vxpose.xlu0.b32.cont [6/16] 0.0, 128
    %152 = vxpose.xlu0.b32.cont [7/16] 0.0, 128
    %153 = vxpose.xlu0.b32.cont [8/16] 0.0, 128
    %154 = vxpose.xlu0.b32.cont [9/16] 0.0, 128
    %155 = vxpose.xlu0.b32.cont [10/16] 0.0, 128
    %156 = vxpose.xlu0.b32.cont [11/16] 0.0, 128
    %157 = vxpose.xlu0.b32.cont [12/16] 0.0, 128
    %158 = vxpose.xlu0.b32.cont [13/16] 0.0, 128
    %159 = vxpose.xlu0.b32.cont [14/16] 0.0, 128
    %160 = vxpose.xlu0.b32.cont [15/16] 0.0, 128
    %161 = vxpose.xlu0.b32.end [16/16] 0.0, 128
    %v162 = vpop.trf.xlu0
    %v163 = vpop.trf.xlu0
    %v164 = vpop.trf.xlu0
    %v165 = vpop.trf.xlu0
    %v166 = vpop.trf.xlu0
    %v167 = vpop.trf.xlu0
    %v168 = vpop.trf.xlu0
    %v169 = vpop.trf.xlu0
    %v170 = vpop.trf.xlu0
    %v171 = vpop.trf.xlu0
    %v172 = vpop.trf.xlu0
    %v173 = vpop.trf.xlu0
    %v174 = vpop.trf.xlu0
    %v175 = vpop.trf.xlu0
    %v176 = vpop.trf.xlu0
    %v177 = vpop.trf.xlu0
    %vm178 = vcmask 57344
    %179 = vst.msk [vmem:[#allocation8] sm:$0x1] %vm178, %v162
    // Predicated region
    $region30: #{critic_forward.1} parent=1 // pred_check
      _
    $region31: #{critic_forward.1} parent=1 // pred_check_branch
      %181 = sbr.rel (0) target = $region33
    $region32: #{critic_forward.1} parent=1 // pred_region
      %s183 = ssub.s32 16, 16
      %184 = vsyncadd [#allocation5], %s183
      %s186 = sshll.u32 [#allocation8], 4
      %s187 = int_to_ptr.vmem [resolvable:$true] %s186
      %189 = dma.vmem_to_hbm [thread:$0]  %s187, 16, %s5, [#allocation5]
    $region33: #{critic_forward.1} parent=1 // pred_fallthru
      _
    // Predicated region
    $region34: #{critic_forward.1} parent=1 // pred_check
      _
    $region35: #{critic_forward.1} parent=1 // pred_check_branch
      %191 = sbr.rel (0) target = $region37
    $region36: #{critic_forward.1} parent=1 // pred_region
      %192 = dma.done [#allocation5], 16
    $region37: #{critic_forward.1} parent=1 // pred_fallthru
      _
    %193 = vsyncpa [#allocation4], 1
    %194 = vsyncpa [#allocation7], 1
    %195 = vsyncpa [#allocation5], 1

</llo_original>
